<compile_context>
chip_gen: v5e
topology: v5e:2x2
jax: 0.10.0
libtpu: 0.0.40
codegen_flags: <defaults>
</compile_context>

<pallas_src>
import jax
import jax.numpy as jnp
from jax.experimental import pallas as pl
from jax.experimental.pallas import tpu as pltpu

HIDDEN = 512  # fixed by the module definition


def _round_up(x: int, m: int) -> int:
    return ((x + m - 1) // m) * m


def _cdiv(a: int, b: int) -> int:
    return -(-a // b)


def _tpu_resources():
    """Returns (vmem_capacity_bytes, tensorcores_per_chip) with safe fallbacks."""
    kind = ""
    try:
        kind = jax.devices()[0].device_kind.lower()
    except Exception:
        pass
    is_v7 = "v7" in kind
    vmem_cap = None
    try:
        vmem_cap = int(pltpu.get_tpu_info().vmem_capacity_bytes)
    except Exception:
        vmem_cap = None
    if not vmem_cap or vmem_cap <= 0:
        vmem_cap = (64 << 20) if is_v7 else (128 << 20)
    num_tc = 2 if is_v7 else 1
    return vmem_cap, num_tc


def _vmem_estimate(tile_b: int, d_in: int, d_out_p: int) -> int:
    """Conservative VMEM working-set estimate (bytes) for one grid step."""
    return int(
        2 * tile_b * d_in * 4          # x tiles (f32, double-buffered)
        + 2 * tile_b * d_out_p * 2     # out tiles (bf16, double-buffered)
        + 2 * d_in * HIDDEN * 2        # w1 (bf16, assume double-buffered)
        + 2 * HIDDEN * d_out_p * 2     # w2 (bf16, assume double-buffered)
        + 2 * (HIDDEN + d_out_p) * 4   # biases (f32)
        + tile_b * HIDDEN * (4 + 2)    # f32 hidden + bf16 copy
        + tile_b * d_in * 2            # bf16 copy of the x tile
        + tile_b * d_out_p * 4         # f32 result before the bf16 store cast
    )


def adapter_kernel(x_ref, w1_ref, b1_ref, w2_ref, b2_ref, o_ref):
    # Cast x f32 -> bf16 in-kernel (hidden under MXU slack); avoids a
    # wrapper-side pad/cast HBM round-trip of the activations.
    x = x_ref[...].astype(jnp.bfloat16)
    # First linear: (tile_b, d_in)bf16 @ (d_in, 512)bf16 -> f32 acc.
    h = jnp.dot(x, w1_ref[...], preferred_element_type=jnp.float32)
    # Bias + ReLU in f32 (VPU), then bf16 for the second MXU pass.
    h = jnp.maximum(h + b1_ref[...], 0.0)
    # Second linear: (tile_b, 512)bf16 @ (512, d_out_p)bf16 -> f32 acc.
    out = jnp.dot(h.astype(jnp.bfloat16), w2_ref[...],
                  preferred_element_type=jnp.float32)
    out = out + b2_ref[...]
    # bf16 store: halves the output HBM write (wrapper upcasts if needed).
    o_ref[...] = out.astype(o_ref.dtype)


@jax.jit
def adapter_forward(x, w1, b1, w2, b2):
    """Fused Linear(D_in,512) -> ReLU -> Linear(512,D_out) forward pass.

    x:  (B, D_in) float32
    w1: (D_in, 512), b1: (512,) or (1, 512)
    w2: (512, D_out), b2: (D_out,) or (1, D_out)
    Returns (B, D_out) float32.
    """
    B, d_in = x.shape
    d_out = w2.shape[1]

    # Defensive reshape: accept 1-D biases from a direct PyTorch export.
    b1 = jnp.reshape(b1, (1, HIDDEN)).astype(jnp.float32)
    b2 = jnp.reshape(b2, (1, d_out)).astype(jnp.float32)

    vmem_cap, num_tc = _tpu_resources()

    # Lane-dense padded output width (minimum 128, never beyond that need).
    d_out_p = _round_up(d_out, 128)

    # ---- batch tiling ----------------------------------------------------
    # Even split to minimize padding waste; larger tiles on v5e/v6e (128 MiB
    # VMEM); guarantee >= num_tc grid steps so both v7x TensorCores get work.
    max_tile = 512 if num_tc > 1 else 1024
    nt = _cdiv(B, max_tile)
    if num_tc > 1 and nt < num_tc and B >= num_tc * 8:
        nt = num_tc
    tile_b = _round_up(_cdiv(B, nt), 8)
    # Auto-shrink tile_b if the working set would not fit comfortably in VMEM.
    vmem_budget = int(0.7 * vmem_cap)
    while _vmem_estimate(tile_b, d_in, d_out_p) > vmem_budget and tile_b > 64:
        tile_b = max(64, _round_up(tile_b // 2, 8))

    b_p = _round_up(B, tile_b)
    grid = (b_p // tile_b,)

    # ---- operand prep ------------------------------------------------------
    # x stays f32 and feature-unpadded (no wrapper pad/cast round-trip); only
    # pad the batch dim when the tile does not divide B.
    x_p = x if b_p == B else jnp.pad(x, ((0, b_p - B), (0, 0)))
    w1_bf = w1.astype(jnp.bfloat16)
    w2_bf = jnp.pad(w2, ((0, 0), (0, d_out_p - d_out))).astype(jnp.bfloat16)
    b2_p = jnp.pad(b2, ((0, 0), (0, d_out_p - d_out)))

    est = _vmem_estimate(tile_b, d_in, d_out_p)
    vmem_limit = int(min(max(int(1.5 * est), 32 << 20), int(0.75 * vmem_cap)))

    cost = pl.CostEstimate(
        flops=2 * b_p * (d_in * HIDDEN + HIDDEN * d_out_p),
        transcendentals=0,
        bytes_accessed=(x_p.size * 4 + w1_bf.size * 2 + w2_bf.size * 2
                        + b1.size * 4 + b2_p.size * 4 + b_p * d_out_p * 2),
    )

    out_p = pl.pallas_call(
        adapter_kernel,
        out_shape=jax.ShapeDtypeStruct((b_p, d_out_p), jnp.bfloat16),
        grid_spec=pltpu.PrefetchScalarGridSpec(
            num_scalar_prefetch=0,
            grid=grid,
            in_specs=[
                pl.BlockSpec((tile_b, d_in), lambda i: (i, 0)),     # x tile (f32)
                pl.BlockSpec((d_in, HIDDEN), lambda i: (0, 0)),     # w1 resident
                pl.BlockSpec((1, HIDDEN), lambda i: (0, 0)),        # b1 resident
                pl.BlockSpec((HIDDEN, d_out_p), lambda i: (0, 0)),  # w2 resident
                pl.BlockSpec((1, d_out_p), lambda i: (0, 0)),       # b2 resident
            ],
            out_specs=pl.BlockSpec((tile_b, d_out_p), lambda i: (i, 0)),
        ),
        compiler_params=pltpu.CompilerParams(
            dimension_semantics=("parallel",),
            vmem_limit_bytes=vmem_limit,
        ),
        cost_estimate=cost,
    )(x_p, w1_bf, b1, w2_bf, b2_p)

    # Slice back to the logical shape; upcast to match the module's f32 output.
    return out_p[:B, :d_out].astype(jnp.float32)


def init_adapter_params(key, input_dim, output_dim, dtype=jnp.float32):
    """Deterministic init mimicking PyTorch's default Linear init
    (uniform in +/- 1/sqrt(fan_in)). Weights stored as (in, out)."""
    k1, k2, k3, k4 = jax.random.split(key, 4)
    bound1 = 1.0 / jnp.sqrt(jnp.asarray(input_dim, dtype))
    bound2 = 1.0 / jnp.sqrt(jnp.asarray(HIDDEN, dtype))
    w1 = jax.random.uniform(k1, (input_dim, HIDDEN), dtype, -bound1, bound1)
    b1 = jax.random.uniform(k2, (1, HIDDEN), dtype, -bound1, bound1)
    w2 = jax.random.uniform(k3, (HIDDEN, output_dim), dtype, -bound2, bound2)
    b2 = jax.random.uniform(k4, (1, output_dim), dtype, -bound2, bound2)
    return w1, b1, w2, b2


if __name__ == "__main__":
    input_dim = 32
    output_dim = 16
    batch = 8

    key = jax.random.PRNGKey(0)
    kx, kp = jax.random.split(key)
    x = jax.random.normal(kx, (batch, input_dim), jnp.float32)
    w1, b1, w2, b2 = init_adapter_params(kp, input_dim, output_dim)

    out = adapter_forward(x, w1, b1, w2, b2)
    out = jax.block_until_ready(out)

    # Reference check (plain JAX, f32). bf16 matmul inputs / bf16 kernel
    # output with f32 accumulation -> loosened tolerance vs pure-f32 ref.
    ref = jnp.maximum(x @ w1 + b1, 0.0) @ w2 + b2
    assert out.shape == (batch, output_dim)
    assert jnp.allclose(out, ref, atol=1e-2, rtol=1e-2)

    print("KERNEL_OK")
</pallas_src>

<mosaic_0001>
module attributes {stable_mosaic.version = 11 : i64} {
  func.func @adapter_kernel(%arg0: i32, %arg1: memref<8x32xf32, #tpu.memory_space<vmem>>, %arg2: memref<32x512xbf16, #tpu.memory_space<vmem>>, %arg3: memref<1x512xf32, #tpu.memory_space<vmem>>, %arg4: memref<512x128xbf16, #tpu.memory_space<vmem>>, %arg5: memref<1x128xf32, #tpu.memory_space<vmem>>, %arg6: memref<8x128xbf16, #tpu.memory_space<vmem>>) attributes {dimension_semantics = [#tpu.dimension_semantics<parallel>], iteration_bounds = array<i64: 1>, scalar_prefetch = 0 : i64, scratch_operands = 0 : i64, tpu.core_type = #tpu.core_type<tc>, window_params = [{transform_indices = @transform_0, window_bounds = array<i64: 8, 32>}, {pipeline_mode = #tpu.pipeline_mode<synchronous>, transform_indices = @transform_1, window_bounds = array<i64: 32, 512>}, {pipeline_mode = #tpu.pipeline_mode<synchronous>, transform_indices = @transform_2, window_bounds = array<i64: 1, 512>}, {pipeline_mode = #tpu.pipeline_mode<synchronous>, transform_indices = @transform_3, window_bounds = array<i64: 512, 128>}, {pipeline_mode = #tpu.pipeline_mode<synchronous>, transform_indices = @transform_4, window_bounds = array<i64: 1, 128>}, {transform_indices = @transform_5, window_bounds = array<i64: 8, 128>}]} {
    %c0 = arith.constant 0 : index
    %c0_0 = arith.constant 0 : index
    %0 = vector.load %arg1[%c0, %c0_0] : memref<8x32xf32, #tpu.memory_space<vmem>>, vector<8x32xf32>
    %1 = arith.truncf %0 : vector<8x32xf32> to vector<8x32xbf16>
    %c0_1 = arith.constant 0 : index
    %c0_2 = arith.constant 0 : index
    %2 = vector.load %arg2[%c0_1, %c0_2] : memref<32x512xbf16, #tpu.memory_space<vmem>>, vector<32x512xbf16>
    %cst = arith.constant dense<0.000000e+00> : vector<8x512xf32>
    %3 = tpu.matmul %1, %2, %cst {dimension_numbers = #tpu.dot_dimension_numbers<[1], [0], [0], [1], [0, 0, 1, 1], [], []>} : vector<8x32xbf16>, vector<32x512xbf16>, vector<8x512xf32> -> vector<8x512xf32>
    %c0_3 = arith.constant 0 : index
    %c0_4 = arith.constant 0 : index
    %4 = vector.load %arg3[%c0_3, %c0_4] : memref<1x512xf32, #tpu.memory_space<vmem>>, vector<1x512xf32>
    %5 = vector.broadcast %4 : vector<1x512xf32> to vector<8x512xf32>
    %6 = arith.addf %3, %5 : vector<8x512xf32>
    %cst_5 = arith.constant 0.000000e+00 : f32
    %7 = vector.broadcast %cst_5 : f32 to vector<8x512xf32>
    %8 = arith.maximumf %6, %7 : vector<8x512xf32>
    %9 = arith.truncf %8 : vector<8x512xf32> to vector<8x512xbf16>
    %c0_6 = arith.constant 0 : index
    %c0_7 = arith.constant 0 : index
    %10 = vector.load %arg4[%c0_6, %c0_7] : memref<512x128xbf16, #tpu.memory_space<vmem>>, vector<512x128xbf16>
    %cst_8 = arith.constant dense<0.000000e+00> : vector<8x128xf32>
    %11 = tpu.matmul %9, %10, %cst_8 {dimension_numbers = #tpu.dot_dimension_numbers<[1], [0], [0], [1], [0, 0, 1, 1], [], []>} : vector<8x512xbf16>, vector<512x128xbf16>, vector<8x128xf32> -> vector<8x128xf32>
    %c0_9 = arith.constant 0 : index
    %c0_10 = arith.constant 0 : index
    %12 = vector.load %arg5[%c0_9, %c0_10] : memref<1x128xf32, #tpu.memory_space<vmem>>, vector<1x128xf32>
    %13 = vector.broadcast %12 : vector<1x128xf32> to vector<8x128xf32>
    %14 = arith.addf %11, %13 : vector<8x128xf32>
    %15 = arith.truncf %14 : vector<8x128xf32> to vector<8x128xbf16>
    %c0_11 = arith.constant 0 : index
    %c0_12 = arith.constant 0 : index
    %16 = vector.load %arg6[%c0_11, %c0_12] : memref<8x128xbf16, #tpu.memory_space<vmem>>, vector<8x128xbf16>
    tpu.vector_store %arg6[%c0_11, %c0_12], %15 {strides = array<i32>} : memref<8x128xbf16, #tpu.memory_space<vmem>>, vector<8x128xbf16>,
    return
  }
  func.func @transform_0(%arg0: i32) -> (i32, i32) {
    %c0_i32 = arith.constant 0 : i32
    %c0_i32_0 = arith.constant 0 : i32
    return %arg0, %c0_i32 : i32, i32
  }
  func.func @transform_1(%arg0: i32) -> (i32, i32) {
    %c0_i32 = arith.constant 0 : i32
    %c0_i32_0 = arith.constant 0 : i32
    %c0_i32_1 = arith.constant 0 : i32
    return %c0_i32, %c0_i32_0 : i32, i32
  }
  func.func @transform_2(%arg0: i32) -> (i32, i32) {
    %c0_i32 = arith.constant 0 : i32
    %c0_i32_0 = arith.constant 0 : i32
    %c0_i32_1 = arith.constant 0 : i32
    return %c0_i32, %c0_i32_0 : i32, i32
  }
  func.func @transform_3(%arg0: i32) -> (i32, i32) {
    %c0_i32 = arith.constant 0 : i32
    %c0_i32_0 = arith.constant 0 : i32
    %c0_i32_1 = arith.constant 0 : i32
    return %c0_i32, %c0_i32_0 : i32, i32
  }
  func.func @transform_4(%arg0: i32) -> (i32, i32) {
    %c0_i32 = arith.constant 0 : i32
    %c0_i32_0 = arith.constant 0 : i32
    %c0_i32_1 = arith.constant 0 : i32
    return %c0_i32, %c0_i32_0 : i32, i32
  }
  func.func @transform_5(%arg0: i32) -> (i32, i32) {
    %c0_i32 = arith.constant 0 : i32
    %c0_i32_0 = arith.constant 0 : i32
    return %arg0, %c0_i32 : i32, i32
  }
}

</mosaic_0001>

<llo_original>
// kernel: adapter_forward.1
$region0: #{adapter_forward.1}
  #allocation0 [shape = 'u32[]', space=smem, size = 0x4, offset = 0x4, fixed_abs, tag = 'smem constant byte address 0x4 - core index']
  #allocation1 [shape = 'u32[72,128]{1,0:T(1,128)}', space=vmem, size = 0x9000, scoped, tag = 'internal scratch']
  %s0 = inlined_call_operand.vmem [shape: f32[8,32], index: 0, kind: input, shape index: {}]
  %s1 = inlined_call_operand.vmem [shape: bf16[32,512], index: 1, kind: input, shape index: {}]
  %s2 = inlined_call_operand.vmem [shape: f32[1,512], index: 2, kind: input, shape index: {}]
  %s3 = inlined_call_operand.vmem [shape: bf16[512,128], index: 3, kind: input, shape index: {}]
  %s4 = inlined_call_operand.vmem [shape: f32[1,128], index: 4, kind: input, shape index: {}]
  %s5 = inlined_call_operand.vmem [shape: bf16[8,128], index: 5, kind: output, shape index: {}]
  %s6 = sld [smem:[#allocation0]]
  $region30: #{adapter_forward.1} parent=0
    _
  %s8 = ssub.s32 1, %s6
  %s9 = scalar_select 0, %s8, %s6
  // Predicated region
  $region2: #{adapter_forward.1} parent=0 // pred_check
    _
  $region3: #{adapter_forward.1} parent=0 // pred_check_branch
    %11 = sbr.rel (0) target = $region5
  $region4: #{adapter_forward.1} parent=0 // pred_region
    _
  $region5: #{adapter_forward.1} parent=0 // pred_fallthru
    _
  // Predicated region
  $region6: #{adapter_forward.1} parent=0 // pred_check
    _
  $region7: #{adapter_forward.1} parent=0 // pred_check_branch
    %13 = sbr.rel (0) target = $region9
  $region8: #{adapter_forward.1} parent=0 // pred_region
    _
  $region9: #{adapter_forward.1} parent=0 // pred_fallthru
    _
  // Predicated region
  $region10: #{adapter_forward.1} parent=0 // pred_check
    _
  $region11: #{adapter_forward.1} parent=0 // pred_check_branch
    %15 = sbr.rel (0) target = $region13
  $region12: #{adapter_forward.1} parent=0 // pred_region
    _
  $region13: #{adapter_forward.1} parent=0 // pred_fallthru
    _
  // Predicated region
  $region14: #{adapter_forward.1} parent=0 // pred_check
    _
  $region15: #{adapter_forward.1} parent=0 // pred_check_branch
    %17 = sbr.rel (0) target = $region17
  $region16: #{adapter_forward.1} parent=0 // pred_region
    _
  $region17: #{adapter_forward.1} parent=0 // pred_fallthru
    _
  // Predicated region
  $region18: #{adapter_forward.1} parent=0 // pred_check
    _
  $region19: #{adapter_forward.1} parent=0 // pred_check_branch
    %19 = sbr.rel (0) target = $region21
  $region20: #{adapter_forward.1} parent=0 // pred_region
    _
  $region21: #{adapter_forward.1} parent=0 // pred_fallthru
    _
  %v21 = vld [vmem:[%s0] sm:$0xff]
  %v22 = vpack.c.bf16 %v21, %v21
  %v23 = vld [vmem:[%s1] sm:$0xff]
  %v24 = vld [vmem:[%s1 + $0x8] sm:$0xff]
  %v25 = vld [vmem:[%s1 + $0x10] sm:$0xff]
  %v26 = vld [vmem:[%s1 + $0x18] sm:$0xff]
  %v27 = vld [vmem:[%s1 + $0x20] sm:$0xff]
  %v28 = vld [vmem:[%s1 + $0x28] sm:$0xff]
  %v29 = vld [vmem:[%s1 + $0x30] sm:$0xff]
  %v30 = vld [vmem:[%s1 + $0x38] sm:$0xff]
  %v31 = vld [vmem:[%s2] sm:$0xf]
  %v33 = vperm.slane %v31, 0
  %v34 = vperm.slane %v31, 1
  %v35 = vperm.slane %v31, 2
  %v36 = vperm.slane %v31, 3
  %v49 = vunpack.c.l.b16 %v23
  %v50 = vunpack.c.h.b16 %v23
  %v51 = vunpack.c.l.b16 %v24
  %v52 = vunpack.c.h.b16 %v24
  %v53 = vunpack.c.l.b16 %v25
  %v54 = vunpack.c.h.b16 %v25
  %v55 = vunpack.c.l.b16 %v26
  %v56 = vunpack.c.h.b16 %v26
  %v57 = vunpack.c.l.b16 %v27
  %v58 = vunpack.c.h.b16 %v27
  %v59 = vunpack.c.l.b16 %v28
  %v60 = vunpack.c.h.b16 %v28
  %v61 = vunpack.c.l.b16 %v29
  %v62 = vunpack.c.h.b16 %v29
  %v63 = vunpack.c.l.b16 %v30
  %v64 = vunpack.c.h.b16 %v30
  %v65 = vpack.c.b16 %v53, %v49
  %v66 = vpack.c.b16 %v54, %v50
  %v67 = vpack.c.b16 %v55, %v51
  %v68 = vpack.c.b16 %v56, %v52
  %v69 = vpack.c.b16 %v61, %v57
  %v70 = vpack.c.b16 %v62, %v58
  %v71 = vpack.c.b16 %v63, %v59
  %v72 = vpack.c.b16 %v64, %v60
  %vm81 = vcmask 261120
  %v83 = vsel %vm81, %v22, 0
  %85 = vmatpush.bf16.msra.mxu0 0
  %86 = vmatpush.bf16.msra.mxu0 0
  %87 = vmatpush.bf16.msra.mxu0 0
  %88 = vmatpush.bf16.msra.mxu0 0
  %89 = vmatpush.bf16.msra.mxu0 0
  %90 = vmatpush.bf16.msra.mxu0 0
  %91 = vmatpush.bf16.msra.mxu0 %v69
  %92 = vmatpush.bf16.msra.mxu0 %v65
  %93 = vmatmul.bf16.gmra.mxu0 %v83
  %v94 = vpop.f32.mrf.mxu0
  %v95 = vadd.f32 %v33, %v94
  %v96 = vpop.f32.mrf.mxu0
  %97 = vdwg.mxu0
  %98 = vmatpush.bf16.msra.mxu0 0
  %99 = vmatpush.bf16.msra.mxu0 0
  %100 = vmatpush.bf16.msra.mxu0 0
  %101 = vmatpush.bf16.msra.mxu0 0
  %102 = vmatpush.bf16.msra.mxu0 0
  %103 = vmatpush.bf16.msra.mxu0 0
  %104 = vmatpush.bf16.msra.mxu0 %v70
  %105 = vmatpush.bf16.msra.mxu0 %v66
  %106 = vmatmul.bf16.gmra.mxu0 %v83
  %v107 = vpop.f32.mrf.mxu0
  %v108 = vadd.f32 %v34, %v107
  %v109 = vpop.f32.mrf.mxu0
  %110 = vdwg.mxu0
  %111 = vmatpush.bf16.msra.mxu0 0
  %112 = vmatpush.bf16.msra.mxu0 0
  %113 = vmatpush.bf16.msra.mxu0 0
  %114 = vmatpush.bf16.msra.mxu0 0
  %115 = vmatpush.bf16.msra.mxu0 0
  %116 = vmatpush.bf16.msra.mxu0 0
  %117 = vmatpush.bf16.msra.mxu0 %v71
  %118 = vmatpush.bf16.msra.mxu0 %v67
  %119 = vmatmul.bf16.gmra.mxu0 %v83
  %v120 = vpop.f32.mrf.mxu0
  %v121 = vadd.f32 %v35, %v120
  %v122 = vpop.f32.mrf.mxu0
  %123 = vdwg.mxu0
  %124 = vmatpush.bf16.msra.mxu0 0
  %125 = vmatpush.bf16.msra.mxu0 0
  %126 = vmatpush.bf16.msra.mxu0 0
  %127 = vmatpush.bf16.msra.mxu0 0
  %128 = vmatpush.bf16.msra.mxu0 0
  %129 = vmatpush.bf16.msra.mxu0 0
  %130 = vmatpush.bf16.msra.mxu0 %v72
  %131 = vmatpush.bf16.msra.mxu0 %v68
  %132 = vmatmul.bf16.gmra.mxu0 %v83
  %v133 = vpop.f32.mrf.mxu0
  %v134 = vadd.f32 %v36, %v133
  %v135 = vpop.f32.mrf.mxu0
  %136 = vdwg.mxu0
  %v137 = vmax.f32 %v95, 0.0
  %v138 = vmax.f32 %v108, 0.0
  %v139 = vmax.f32 %v121, 0.0
  %v140 = vmax.f32 %v134, 0.0
  %v141 = vpack.c.bf16 %v137, %v137
  %v142 = vpack.c.bf16 %v138, %v138
  %v143 = vpack.c.bf16 %v139, %v139
  %v144 = vpack.c.bf16 %v140, %v140
  %v145 = vld [vmem:[%s3] sm:$0xf]
  %v146 = vld [vmem:[%s3 + $0x4] sm:$0xf]
  %v147 = vld [vmem:[%s3 + $0x8] sm:$0xf]
  %v148 = vld [vmem:[%s3 + $0xc] sm:$0xf]
  %v149 = vld [vmem:[%s3 + $0x10] sm:$0xf]
  %v150 = vld [vmem:[%s3 + $0x14] sm:$0xf]
  %v151 = vld [vmem:[%s3 + $0x18] sm:$0xf]
  %v152 = vld [vmem:[%s3 + $0x1c] sm:$0xf]
  %v153 = vld [vmem:[%s3 + $0x20] sm:$0xf]
  %v154 = vld [vmem:[%s3 + $0x24] sm:$0xf]
  %v155 = vld [vmem:[%s3 + $0x28] sm:$0xf]
  %v156 = vld [vmem:[%s3 + $0x2c] sm:$0xf]
  %v157 = vld [vmem:[%s3 + $0x30] sm:$0xf]
  %v158 = vld [vmem:[%s3 + $0x34] sm:$0xf]
  %v159 = vld [vmem:[%s3 + $0x38] sm:$0xf]
  %v160 = vld [vmem:[%s3 + $0x3c] sm:$0xf]
  %v161 = vld [vmem:[%s3 + $0x40] sm:$0xf]
  %v162 = vld [vmem:[%s3 + $0x44] sm:$0xf]
  %v163 = vld [vmem:[%s3 + $0x48] sm:$0xf]
  %v164 = vld [vmem:[%s3 + $0x4c] sm:$0xf]
  %v165 = vld [vmem:[%s3 + $0x50] sm:$0xf]
  %v166 = vld [vmem:[%s3 + $0x54] sm:$0xf]
  %v167 = vld [vmem:[%s3 + $0x58] sm:$0xf]
  %v168 = vld [vmem:[%s3 + $0x5c] sm:$0xf]
  %v169 = vld [vmem:[%s3 + $0x60] sm:$0xf]
  %v170 = vld [vmem:[%s3 + $0x64] sm:$0xf]
  %v171 = vld [vmem:[%s3 + $0x68] sm:$0xf]
  %v172 = vld [vmem:[%s3 + $0x6c] sm:$0xf]
  %v173 = vld [vmem:[%s3 + $0x70] sm:$0xf]
  %v174 = vld [vmem:[%s3 + $0x74] sm:$0xf]
  %v175 = vld [vmem:[%s3 + $0x78] sm:$0xf]
  %v176 = vld [vmem:[%s3 + $0x7c] sm:$0xf]
  %v177 = vld [vmem:[%s3 + $0x80] sm:$0xf]
  %v178 = vld [vmem:[%s3 + $0x84] sm:$0xf]
  %v179 = vld [vmem:[%s3 + $0x88] sm:$0xf]
  %v180 = vld [vmem:[%s3 + $0x8c] sm:$0xf]
  %v181 = vld [vmem:[%s3 + $0x90] sm:$0xf]
  %v182 = vld [vmem:[%s3 + $0x94] sm:$0xf]
  %v183 = vld [vmem:[%s3 + $0x98] sm:$0xf]
  %v184 = vld [vmem:[%s3 + $0x9c] sm:$0xf]
  %v185 = vld [vmem:[%s3 + $0xa0] sm:$0xf]
  %v186 = vld [vmem:[%s3 + $0xa4] sm:$0xf]
  %v187 = vld [vmem:[%s3 + $0xa8] sm:$0xf]
  %v188 = vld [vmem:[%s3 + $0xac] sm:$0xf]
  %v189 = vld [vmem:[%s3 + $0xb0] sm:$0xf]
  %v190 = vld [vmem:[%s3 + $0xb4] sm:$0xf]
  %v191 = vld [vmem:[%s3 + $0xb8] sm:$0xf]
  %v192 = vld [vmem:[%s3 + $0xbc] sm:$0xf]
  %v193 = vld [vmem:[%s3 + $0xc0] sm:$0xf]
  %v194 = vld [vmem:[%s3 + $0xc4] sm:$0xf]
  %v195 = vld [vmem:[%s3 + $0xc8] sm:$0xf]
  %v196 = vld [vmem:[%s3 + $0xcc] sm:$0xf]
  %v197 = vld [vmem:[%s3 + $0xd0] sm:$0xf]
  %v198 = vld [vmem:[%s3 + $0xd4] sm:$0xf]
  %v199 = vld [vmem:[%s3 + $0xd8] sm:$0xf]
  %v200 = vld [vmem:[%s3 + $0xdc] sm:$0xf]
  %v201 = vld [vmem:[%s3 + $0xe0] sm:$0xf]
  %v202 = vld [vmem:[%s3 + $0xe4] sm:$0xf]
  %v203 = vld [vmem:[%s3 + $0xe8] sm:$0xf]
  %v204 = vld [vmem:[%s3 + $0xec] sm:$0xf]
  %v205 = vld [vmem:[%s3 + $0xf0] sm:$0xf]
  %v206 = vld [vmem:[%s3 + $0xf4] sm:$0xf]
  %v207 = vld [vmem:[%s3 + $0xf8] sm:$0xf]
  %v208 = vld [vmem:[%s3 + $0xfc] sm:$0xf]
  %v209 = vld [vmem:[%s4] sm:$0x1]
  %v211 = vperm.slane %v209, 0
  %v277 = vunpack.c.l.b16 %v145
  %v278 = vunpack.c.l.b16 %v146
  %v279 = vunpack.c.l.b16 %v147
  %v280 = vunpack.c.l.b16 %v148
  %v281 = vunpack.c.l.b16 %v149
  %v282 = vunpack.c.l.b16 %v150
  %v283 = vunpack.c.l.b16 %v151
  %v284 = vunpack.c.l.b16 %v152
  %v285 = vunpack.c.l.b16 %v153
  %v286 = vunpack.c.l.b16 %v154
  %v287 = vunpack.c.l.b16 %v155
  %v288 = vunpack.c.l.b16 %v156
  %v289 = vunpack.c.l.b16 %v157
  %v290 = vunpack.c.l.b16 %v158
  %v291 = vunpack.c.l.b16 %v159
  %v292 = vunpack.c.l.b16 %v160
  %v293 = vunpack.c.l.b16 %v161
  %v294 = vunpack.c.l.b16 %v162
  %v295 = vunpack.c.l.b16 %v163
  %v296 = vunpack.c.l.b16 %v164
  %v297 = vunpack.c.l.b16 %v165
  %v298 = vunpack.c.l.b16 %v166
  %v299 = vunpack.c.l.b16 %v167
  %v300 = vunpack.c.l.b16 %v168
  %v301 = vunpack.c.l.b16 %v169
  %v302 = vunpack.c.l.b16 %v170
  %v303 = vunpack.c.l.b16 %v171
  %v304 = vunpack.c.l.b16 %v172
  %v305 = vunpack.c.l.b16 %v173
  %v306 = vunpack.c.l.b16 %v174
  %v307 = vunpack.c.l.b16 %v175
  %v308 = vunpack.c.l.b16 %v176
  %v309 = vunpack.c.l.b16 %v177
  %v310 = vunpack.c.l.b16 %v178
  %v311 = vunpack.c.l.b16 %v179
  %v312 = vunpack.c.l.b16 %v180
  %v313 = vunpack.c.l.b16 %v181
  %v314 = vunpack.c.l.b16 %v182
  %v315 = vunpack.c.l.b16 %v183
  %v316 = vunpack.c.l.b16 %v184
  %v317 = vunpack.c.l.b16 %v185
  %v318 = vunpack.c.l.b16 %v186
  %v319 = vunpack.c.l.b16 %v187
  %v320 = vunpack.c.l.b16 %v188
  %v321 = vunpack.c.l.b16 %v189
  %v322 = vunpack.c.l.b16 %v190
  %v323 = vunpack.c.l.b16 %v191
  %v324 = vunpack.c.l.b16 %v192
  %v325 = vunpack.c.l.b16 %v193
  %v326 = vunpack.c.l.b16 %v194
  %v327 = vunpack.c.l.b16 %v195
  %v328 = vunpack.c.l.b16 %v196
  %v329 = vunpack.c.l.b16 %v197
  %v330 = vunpack.c.l.b16 %v198
  %v331 = vunpack.c.l.b16 %v199
  %v332 = vunpack.c.l.b16 %v200
  %v333 = vunpack.c.l.b16 %v201
  %v334 = vunpack.c.l.b16 %v202
  %v335 = vunpack.c.l.b16 %v203
  %v336 = vunpack.c.l.b16 %v204
  %v337 = vunpack.c.l.b16 %v205
  %v338 = vunpack.c.l.b16 %v206
  %v339 = vunpack.c.l.b16 %v207
  %v340 = vunpack.c.l.b16 %v208
  %v341 = vpack.c.b16 %v278, %v277
  %v342 = vpack.c.b16 %v280, %v279
  %v343 = vpack.c.b16 %v282, %v281
  %v344 = vpack.c.b16 %v284, %v283
  %v345 = vpack.c.b16 %v286, %v285
  %v346 = vpack.c.b16 %v288, %v287
  %v347 = vpack.c.b16 %v290, %v289
  %v348 = vpack.c.b16 %v292, %v291
  %v349 = vpack.c.b16 %v294, %v293
  %v350 = vpack.c.b16 %v296, %v295
  %v351 = vpack.c.b16 %v298, %v297
  %v352 = vpack.c.b16 %v300, %v299
  %v353 = vpack.c.b16 %v302, %v301
  %v354 = vpack.c.b16 %v304, %v303
  %v355 = vpack.c.b16 %v306, %v305
  %v356 = vpack.c.b16 %v308, %v307
  %v357 = vpack.c.b16 %v310, %v309
  %v358 = vpack.c.b16 %v312, %v311
  %v359 = vpack.c.b16 %v314, %v313
  %v360 = vpack.c.b16 %v316, %v315
  %v361 = vpack.c.b16 %v318, %v317
  %v362 = vpack.c.b16 %v320, %v319
  %v363 = vpack.c.b16 %v322, %v321
  %v364 = vpack.c.b16 %v324, %v323
  %v365 = vpack.c.b16 %v326, %v325
  %v366 = vpack.c.b16 %v328, %v327
  %v367 = vpack.c.b16 %v330, %v329
  %v368 = vpack.c.b16 %v332, %v331
  %v369 = vpack.c.b16 %v334, %v333
  %v370 = vpack.c.b16 %v336, %v335
  %v371 = vpack.c.b16 %v338, %v337
  %v372 = vpack.c.b16 %v340, %v339
  %405 = vmatpush.bf16.msra.mxu0 %v348
  %406 = vmatpush.bf16.msra.mxu0 %v347
  %407 = vmatpush.bf16.msra.mxu0 %v346
  %408 = vmatpush.bf16.msra.mxu0 %v345
  %409 = vmatpush.bf16.msra.mxu0 %v344
  %410 = vmatpush.bf16.msra.mxu0 %v343
  %411 = vmatpush.bf16.msra.mxu0 %v342
  %412 = vmatpush.bf16.msra.mxu0 %v341
  %413 = vmatmul.bf16.gmra.mxu0 %v141
  %v414 = vpop.f32.mrf.mxu0
  %v415 = vadd.f32 %v211, %v414
  %v416 = vpop.f32.mrf.mxu0
  %417 = vdwg.mxu0
  %418 = vmatpush.bf16.msra.mxu0 %v356
  %419 = vmatpush.bf16.msra.mxu0 %v355
  %420 = vmatpush.bf16.msra.mxu0 %v354
  %421 = vmatpush.bf16.msra.mxu0 %v353
  %422 = vmatpush.bf16.msra.mxu0 %v352
  %423 = vmatpush.bf16.msra.mxu0 %v351
  %424 = vmatpush.bf16.msra.mxu0 %v350
  %425 = vmatpush.bf16.msra.mxu0 %v349
  %426 = vmatmul.bf16.gmra.mxu0 %v142
  %v427 = vpop.f32.mrf.mxu0
  %v428 = vadd.f32 %v415, %v427
  %v429 = vpop.f32.mrf.mxu0
  %430 = vdwg.mxu0
  %431 = vmatpush.bf16.msra.mxu0 %v364
  %432 = vmatpush.bf16.msra.mxu0 %v363
  %433 = vmatpush.bf16.msra.mxu0 %v362
  %434 = vmatpush.bf16.msra.mxu0 %v361
  %435 = vmatpush.bf16.msra.mxu0 %v360
  %436 = vmatpush.bf16.msra.mxu0 %v359
  %437 = vmatpush.bf16.msra.mxu0 %v358
  %438 = vmatpush.bf16.msra.mxu0 %v357
  %439 = vmatmul.bf16.gmra.mxu0 %v143
  %v440 = vpop.f32.mrf.mxu0
  %v441 = vadd.f32 %v428, %v440
  %v442 = vpop.f32.mrf.mxu0
  %443 = vdwg.mxu0
  %444 = vmatpush.bf16.msra.mxu0 %v372
  %445 = vmatpush.bf16.msra.mxu0 %v371
  %446 = vmatpush.bf16.msra.mxu0 %v370
  %447 = vmatpush.bf16.msra.mxu0 %v369
  %448 = vmatpush.bf16.msra.mxu0 %v368
  %449 = vmatpush.bf16.msra.mxu0 %v367
  %450 = vmatpush.bf16.msra.mxu0 %v366
  %451 = vmatpush.bf16.msra.mxu0 %v365
  %452 = vmatmul.bf16.gmra.mxu0 %v144
  %v453 = vpop.f32.mrf.mxu0
  %v454 = vadd.f32 %v441, %v453
  %v455 = vpop.f32.mrf.mxu0
  %456 = vdwg.mxu0
  %v457 = vpack.c.bf16 %v454, %v454
  %458 = vst [vmem:[%s5] sm:$0xf] %v457
  // Predicated region
  $region22: #{adapter_forward.1} parent=0 // pred_check
    _
  $region23: #{adapter_forward.1} parent=0 // pred_check_branch
    %460 = sbr.rel (0) target = $region25
  $region24: #{adapter_forward.1} parent=0 // pred_region
    _
  $region25: #{adapter_forward.1} parent=0 // pred_fallthru
    _
  // Predicated region
  $region26: #{adapter_forward.1} parent=0 // pred_check
    _
  $region27: #{adapter_forward.1} parent=0 // pred_check_branch
    %462 = sbr.rel (0) target = $region29
  $region28: #{adapter_forward.1} parent=0 // pred_region
    _
  $region29: #{adapter_forward.1} parent=0 // pred_fallthru
    _

</llo_original>
